<compile_context>
chip_gen: v6e
topology: v6e:2x2x1
jax: 0.10.0
libtpu: 0.0.40
codegen_flags: <defaults>
</compile_context>

<pallas_src>
import functools

import jax
import jax.numpy as jnp
from jax.experimental import pallas as pl
from jax.experimental.pallas import tpu as pltpu

_BN_EPS = 1e-5
_MAX_TILE = 512          # sublane/lane tile for the (N, N) adjacency stream


def _round_up(x, m):
    return ((x + m - 1) // m) * m


def _choose_tile(n):
    # Tile must be a multiple of 8; for small graphs a single full-array tile.
    return min(_MAX_TILE, _round_up(max(n, 8), 8))


def _vmem_limit_bytes():
    cap = 64 * 1024 * 1024
    try:
        info = pltpu.get_tpu_info()
        cap = int(getattr(info, "vmem_capacity_bytes", cap))
    except Exception:
        pass
    # <= 48 MiB: plenty for resident MLP weights + tiles, headroom on v7x.
    return min(48 * 1024 * 1024, (cap * 3) // 4)


def _compiler_params():
    return pltpu.CompilerParams(
        dimension_semantics=("parallel", "arbitrary"),   # rows parallel, K reduce
        vmem_limit_bytes=_vmem_limit_bytes(),
    )


# ----------------------------------------------------------------------------
# Kernel 1: SAGEConv layer 1 (aggregate-then-project) + folded BN + ReLU
# ----------------------------------------------------------------------------
def _sage1_kernel(invdeg_ref, adj_ref, xk_ref, xi_ref, wl_ref, wr_ref, b_ref,
                  out_ref, acc_ref):
    k = pl.program_id(1)

    @pl.when(k == 0)
    def _():
        acc_ref[...] = jnp.zeros_like(acc_ref)

    # Aggregate raw features (Cin=16 < Cout=64 keeps the N^2 matmul narrow).
    adj = adj_ref[...].astype(jnp.float32)            # 0/1/2... exact in bf16
    acc_ref[...] += jnp.dot(adj, xk_ref[...], preferred_element_type=jnp.float32)

    @pl.when(k == pl.num_programs(1) - 1)
    def _():
        agg = acc_ref[...] * invdeg_ref[...]          # mean aggregation (f32 scale)
        h = (jnp.dot(agg, wl_ref[...], preferred_element_type=jnp.float32)
             + jnp.dot(xi_ref[...], wr_ref[...], preferred_element_type=jnp.float32)
             + b_ref[...])                            # BN folded into W/b
        out_ref[...] = jnp.maximum(h, 0.0)


def sage1(x_pad, adj_bf16, inv_deg, wl, wr, b, *, tile):
    n_pad, cin = x_pad.shape
    cout = wl.shape[1]
    grid = (n_pad // tile, n_pad // tile)
    flops = 2 * n_pad * n_pad * cin + 4 * n_pad * cin * cout
    bytes_accessed = (2 * n_pad * n_pad + 8 * n_pad * cin + 4 * n_pad * cout
                      + 8 * cin * cout + 4 * n_pad)
    return pl.pallas_call(
        _sage1_kernel,
        out_shape=jax.ShapeDtypeStruct((n_pad, cout), jnp.float32),
        grid_spec=pltpu.PrefetchScalarGridSpec(
            num_scalar_prefetch=0,
            grid=grid,
            in_specs=[
                pl.BlockSpec((tile, 1), lambda i, k: (i, 0)),      # inv_deg
                pl.BlockSpec((tile, tile), lambda i, k: (i, k)),   # adj (bf16)
                pl.BlockSpec((tile, cin), lambda i, k: (k, 0)),    # x, K view
                pl.BlockSpec((tile, cin), lambda i, k: (i, 0)),    # x, row view
                pl.BlockSpec((cin, cout), lambda i, k: (0, 0)),    # Wl'
                pl.BlockSpec((cin, cout), lambda i, k: (0, 0)),    # Wr'
                pl.BlockSpec((1, cout), lambda i, k: (0, 0)),      # b'
            ],
            out_specs=pl.BlockSpec((tile, cout), lambda i, k: (i, 0)),
            scratch_shapes=[pltpu.VMEM((tile, cin), jnp.float32)],
        ),
        compiler_params=_compiler_params(),
        cost_estimate=pl.CostEstimate(flops=int(flops), transcendentals=0,
                                      bytes_accessed=int(bytes_accessed)),
    )(inv_deg, adj_bf16, x_pad, x_pad, wl, wr, b)


# ----------------------------------------------------------------------------
# Kernel 2: SAGEConv layer 2 (project-then-aggregate) + folded BN + ReLU,
#           fused with the MLP classifier (32->1024->1024->C) + softmax.
# ----------------------------------------------------------------------------
def _sage2_mlp_kernel(invdeg_ref, adj_ref, x1k_ref, x1i_ref,
                      wl_ref, wr_ref, bc_ref,
                      w1_ref, b1_ref, w2_ref, b2_ref, w3_ref, b3_ref,
                      probs_ref, logits_ref, x2_ref, acc_ref):
    k = pl.program_id(1)

    @pl.when(k == 0)
    def _():
        acc_ref[...] = jnp.zeros_like(acc_ref)

    # Project-then-aggregate: adj @ (x1 @ Wl) -- aggregation is linear so this
    # is exact, and it halves the width of the dominant N^2 matmul (64 -> 32).
    z = jnp.dot(x1k_ref[...], wl_ref[...], preferred_element_type=jnp.float32)
    adj = adj_ref[...].astype(jnp.float32)
    acc_ref[...] += jnp.dot(adj, z, preferred_element_type=jnp.float32)

    @pl.when(k == pl.num_programs(1) - 1)
    def _():
        h = (acc_ref[...] * invdeg_ref[...]
             + jnp.dot(x1i_ref[...], wr_ref[...], preferred_element_type=jnp.float32)
             + bc_ref[...])                           # BN folded into W/b
        x2 = jnp.maximum(h, 0.0)
        x2_ref[...] = x2

        # MLP classifier; weights stay resident in VMEM across the whole grid.
        # TODO(synk): nn.Dropout is identity here (eval semantics); train-mode
        # dropout would need pltpu.prng_seed/prng_random_bits masking.
        h1 = jnp.maximum(
            jnp.dot(x2, w1_ref[...], preferred_element_type=jnp.float32)
            + b1_ref[...], 0.0)
        h2 = jnp.maximum(
            jnp.dot(h1, w2_ref[...], preferred_element_type=jnp.float32)
            + b2_ref[...], 0.0)
        logits = (jnp.dot(h2, w3_ref[...], preferred_element_type=jnp.float32)
                  + b3_ref[...])
        logits_ref[...] = logits

        # softmax over classes, max-stabilized; divide goes to the EUP slot.
        m = jnp.max(logits, axis=1, keepdims=True)
        e = jnp.exp(logits - m)
        probs_ref[...] = e * pl.reciprocal(jnp.sum(e, axis=1, keepdims=True),
                                           approx=True)


def sage2_mlp(x1_pad, adj_bf16, inv_deg, wl, wr, bc,
              w1, b1, w2, b2, w3, b3, *, tile):
    n_pad, cin = x1_pad.shape          # cin = 64
    chid = wl.shape[1]                 # 32
    hid = w1.shape[1]                  # 1024
    ncls = w3.shape[1]
    grid = (n_pad // tile, n_pad // tile)
    flops = (2 * n_pad * n_pad * chid + 4 * n_pad * cin * chid
             + 2 * n_pad * (chid * hid + hid * hid + hid * ncls))
    bytes_accessed = (2 * n_pad * n_pad + 8 * n_pad * cin
                      + 4 * n_pad * (chid + 2 * ncls)
                      + 4 * (2 * cin * chid + chid * hid + hid * hid + hid * ncls)
                      + 4 * n_pad)

    def _full(shape):
        return pl.BlockSpec(shape, lambda i, k: (0, 0))

    return pl.pallas_call(
        _sage2_mlp_kernel,
        out_shape=(jax.ShapeDtypeStruct((n_pad, ncls), jnp.float32),   # softmax
                   jax.ShapeDtypeStruct((n_pad, ncls), jnp.float32),   # logits
                   jax.ShapeDtypeStruct((n_pad, chid), jnp.float32)),  # x_temp_2
        grid_spec=pltpu.PrefetchScalarGridSpec(
            num_scalar_prefetch=0,
            grid=grid,
            in_specs=[
                pl.BlockSpec((tile, 1), lambda i, k: (i, 0)),      # inv_deg
                pl.BlockSpec((tile, tile), lambda i, k: (i, k)),   # adj (bf16)
                pl.BlockSpec((tile, cin), lambda i, k: (k, 0)),    # x1, K view
                pl.BlockSpec((tile, cin), lambda i, k: (i, 0)),    # x1, row view
                _full((cin, chid)), _full((cin, chid)), _full((1, chid)),
                _full((chid, hid)), _full((1, hid)),
                _full((hid, hid)), _full((1, hid)),
                _full((hid, ncls)), _full((1, ncls)),
            ],
            out_specs=(
                pl.BlockSpec((tile, ncls), lambda i, k: (i, 0)),
                pl.BlockSpec((tile, ncls), lambda i, k: (i, 0)),
                pl.BlockSpec((tile, chid), lambda i, k: (i, 0)),
            ),
            scratch_shapes=[pltpu.VMEM((tile, chid), jnp.float32)],
        ),
        compiler_params=_compiler_params(),
        cost_estimate=pl.CostEstimate(flops=int(flops),
                                      transcendentals=int(n_pad * ncls),
                                      bytes_accessed=int(bytes_accessed)),
    )(inv_deg, adj_bf16, x1_pad, x1_pad, wl, wr, bc, w1, b1, w2, b2, w3, b3)


# ----------------------------------------------------------------------------
# Graph / parameter preprocessing + full forward
# ----------------------------------------------------------------------------
def _build_graph(edge_index, n_pad):
    """Edge-count adjacency (bf16, exact) + f32 inverse in-degree.

    A_bin @ X summed over neighbors, then scaled by 1/deg == scatter-mean
    aggregation of PyG SAGEConv (edge j->i contributes x_j to node i).
    """
    # TODO(synk): the edge-list -> dense adjacency scatter has no clean Pallas
    # TPU equivalent (data-dependent scatter); done with a plain JAX scatter-add.
    src, dst = edge_index[0], edge_index[1]
    counts = jnp.zeros((n_pad, n_pad), jnp.float32).at[dst, src].add(1.0)
    deg = jnp.sum(counts, axis=1, keepdims=True)
    inv_deg = 1.0 / jnp.maximum(deg, 1.0)
    return counts.astype(jnp.bfloat16), inv_deg


def _fold_bn(wl, wr, b, bn, eps=_BN_EPS):
    """Fold inference-mode BatchNorm1d into the SAGE weights/bias."""
    scale = bn["gamma"] * jax.lax.rsqrt(bn["var"] + eps)     # (1, C)
    return wl * scale, wr * scale, (b - bn["mean"]) * scale + bn["beta"]


def topology_extraction_forward(params, x, edge_index):
    """Pallas equivalent of Topology_Extraction.forward((x, edge_index))."""
    n, _ = x.shape
    tile = _choose_tile(n)
    n_pad = _round_up(n, tile)

    adj_bf16, inv_deg = _build_graph(edge_index, n_pad)
    x_pad = jnp.pad(x.astype(jnp.float32), ((0, n_pad - n), (0, 0)))

    wl1, wr1, bc1 = _fold_bn(params["conv1_wl"], params["conv1_wr"],
                             params["conv1_b"], params["bn1"])
    wl2, wr2, bc2 = _fold_bn(params["conv2_wl"], params["conv2_wr"],
                             params["conv2_b"], params["bn2"])

    x1 = sage1(x_pad, adj_bf16, inv_deg, wl1, wr1, bc1, tile=tile)   # x_temp_1

    probs, logits, x2 = sage2_mlp(x1, adj_bf16, inv_deg, wl2, wr2, bc2,
                                  params["w1"], params["b1"],
                                  params["w2"], params["b2"],
                                  params["w3"], params["b3"], tile=tile)

    return probs[:n], logits[:n], x1[:n], x2[:n]


# ----------------------------------------------------------------------------
# Parameter init + pure-JAX reference (for validation)
# ----------------------------------------------------------------------------
def init_params(key, in_channels, num_classes):
    ks = jax.random.split(key, 14)

    def lin(k, fan_in, fan_out):
        return (jax.random.normal(k, (fan_in, fan_out), jnp.float32)
                / jnp.sqrt(jnp.float32(fan_in)))

    def bn(k, c):
        kg, kb, km, kv = jax.random.split(k, 4)
        return dict(
            gamma=1.0 + 0.1 * jax.random.normal(kg, (1, c), jnp.float32),
            beta=0.1 * jax.random.normal(kb, (1, c), jnp.float32),
            mean=0.1 * jax.random.normal(km, (1, c), jnp.float32),
            var=1.0 + 0.5 * jax.random.uniform(kv, (1, c), jnp.float32),
        )

    return {
        "conv1_wl": lin(ks[0], in_channels, 64),
        "conv1_wr": lin(ks[1], in_channels, 64),
        "conv1_b": 0.1 * jax.random.normal(ks[2], (1, 64), jnp.float32),
        "bn1": bn(ks[3], 64),
        "conv2_wl": lin(ks[4], 64, 32),
        "conv2_wr": lin(ks[5], 64, 32),
        "conv2_b": 0.1 * jax.random.normal(ks[6], (1, 32), jnp.float32),
        "bn2": bn(ks[7], 32),
        "w1": lin(ks[8], 32, 1024),
        "b1": 0.1 * jax.random.normal(ks[9], (1, 1024), jnp.float32),
        "w2": lin(ks[10], 1024, 1024),
        "b2": 0.1 * jax.random.normal(ks[11], (1, 1024), jnp.float32),
        "w3": lin(ks[12], 1024, num_classes),
        "b3": 0.1 * jax.random.normal(ks[13], (1, num_classes), jnp.float32),
    }


def _forward_ref(params, x, edge_index):
    hp = jax.lax.Precision.HIGHEST
    n = x.shape[0]
    src, dst = edge_index[0], edge_index[1]
    adj = jnp.zeros((n, n), jnp.float32).at[dst, src].add(1.0)
    deg = jnp.sum(adj, axis=1, keepdims=True)
    adj = adj / jnp.maximum(deg, 1.0)

    def sage(h_in, wl, wr, b, bn):
        agg = jnp.dot(adj, h_in, precision=hp)
        h = jnp.dot(agg, wl, precision=hp) + jnp.dot(h_in, wr, precision=hp) + b
        h = bn["gamma"] * (h - bn["mean"]) / jnp.sqrt(bn["var"] + _BN_EPS) + bn["beta"]
        return jnp.maximum(h, 0.0)

    x1 = sage(x, params["conv1_wl"], params["conv1_wr"], params["conv1_b"], params["bn1"])
    x2 = sage(x1, params["conv2_wl"], params["conv2_wr"], params["conv2_b"], params["bn2"])

    h = jnp.maximum(jnp.dot(x2, params["w1"], precision=hp) + params["b1"], 0.0)
    h = jnp.maximum(jnp.dot(h, params["w2"], precision=hp) + params["b2"], 0.0)
    logits = jnp.dot(h, params["w3"], precision=hp) + params["b3"]
    probs = jax.nn.softmax(logits, axis=1)
    return probs, logits, x1, x2


def _run_case(key, num_nodes, in_channels, num_edges, num_classes):
    k_param, k_x, k_src, k_dst = jax.random.split(key, 4)
    params = init_params(k_param, in_channels, num_classes)
    x = jax.random.normal(k_x, (num_nodes, in_channels), dtype=jnp.float32)
    src = jax.random.randint(k_src, (num_edges,), 0, num_nodes)
    dst = jax.random.randint(k_dst, (num_edges,), 0, num_nodes)
    edge_index = jnp.stack([src, dst], axis=0)

    outs = topology_extraction_forward(params, x, edge_index)
    outs = jax.block_until_ready(outs)

    refs = _forward_ref(params, x, edge_index)
    names = ("softmax", "logits", "x_temp_1", "x_temp_2")
    for name, o, r in zip(names, outs, refs):
        err = float(jnp.max(jnp.abs(o - r)))
        assert jnp.allclose(o, r, atol=1e-3, rtol=1e-3), (name, num_nodes, err)


if __name__ == "__main__":
    key = jax.random.PRNGKey(0)
    k_small, k_big = jax.random.split(key, 2)

    # Small case: single-tile grid (1, 1).
    _run_case(k_small, num_nodes=16, in_channels=16, num_edges=48, num_classes=8)

    # Larger case: exercises the multi-tile grid / K accumulation / megacore path.
    _run_case(k_big, num_nodes=600, in_channels=16, num_edges=3000, num_classes=8)

    print("KERNEL_OK")
</pallas_src>

<mosaic_0001>
module attributes {stable_mosaic.version = 11 : i64} {
  func.func @_sage1_kernel(%arg0: i32, %arg1: i32, %arg2: memref<16x1xf32, #tpu.memory_space<vmem>>, %arg3: memref<16x16xbf16, #tpu.memory_space<vmem>>, %arg4: memref<16x16xf32, #tpu.memory_space<vmem>>, %arg5: memref<16x16xf32, #tpu.memory_space<vmem>>, %arg6: memref<16x64xf32, #tpu.memory_space<vmem>>, %arg7: memref<16x64xf32, #tpu.memory_space<vmem>>, %arg8: memref<1x64xf32, #tpu.memory_space<vmem>>, %arg9: memref<16x64xf32, #tpu.memory_space<vmem>>, %arg10: memref<16x16xf32, #tpu.memory_space<vmem>>) attributes {dimension_semantics = [#tpu.dimension_semantics<parallel>, #tpu.dimension_semantics<arbitrary>], iteration_bounds = array<i64: 1, 1>, scalar_prefetch = 0 : i64, scratch_operands = 1 : i64, tpu.core_type = #tpu.core_type<tc>, window_params = [{transform_indices = @transform_0, window_bounds = array<i64: 16, 1>}, {transform_indices = @transform_1, window_bounds = array<i64: 16, 16>}, {transform_indices = @transform_2, window_bounds = array<i64: 16, 16>}, {transform_indices = @transform_3, window_bounds = array<i64: 16, 16>}, {pipeline_mode = #tpu.pipeline_mode<synchronous>, transform_indices = @transform_4, window_bounds = array<i64: 16, 64>}, {pipeline_mode = #tpu.pipeline_mode<synchronous>, transform_indices = @transform_5, window_bounds = array<i64: 16, 64>}, {pipeline_mode = #tpu.pipeline_mode<synchronous>, transform_indices = @transform_6, window_bounds = array<i64: 1, 64>}, {transform_indices = @transform_7, window_bounds = array<i64: 16, 64>}]} {
    %c0_i32 = arith.constant 0 : i32
    %0 = arith.cmpi eq, %arg1, %c0_i32 : i32
    %1 = arith.extui %0 : i1 to i32
    %c0_i32_0 = arith.constant 0 : i32
    %2 = arith.cmpi ne, %1, %c0_i32_0 : i32
    scf.if %2 {
      %cst_10 = arith.constant 0.000000e+00 : f32
      %13 = vector.broadcast %cst_10 : f32 to vector<16x16xf32>
      %c0_11 = arith.constant 0 : index
      %c0_12 = arith.constant 0 : index
      %14 = vector.load %arg10[%c0_11, %c0_12] : memref<16x16xf32, #tpu.memory_space<vmem>>, vector<16x16xf32>
      tpu.vector_store %arg10[%c0_11, %c0_12], %13 {strides = array<i32>} : memref<16x16xf32, #tpu.memory_space<vmem>>, vector<16x16xf32>,
    } else {
    }
    %c0 = arith.constant 0 : index
    %c0_1 = arith.constant 0 : index
    %3 = vector.load %arg3[%c0, %c0_1] : memref<16x16xbf16, #tpu.memory_space<vmem>>, vector<16x16xbf16>
    %4 = arith.extf %3 : vector<16x16xbf16> to vector<16x16xf32>
    %c0_2 = arith.constant 0 : index
    %c0_3 = arith.constant 0 : index
    %5 = vector.load %arg10[%c0_2, %c0_3] : memref<16x16xf32, #tpu.memory_space<vmem>>, vector<16x16xf32>
    %c0_4 = arith.constant 0 : index
    %c0_5 = arith.constant 0 : index
    %6 = vector.load %arg4[%c0_4, %c0_5] : memref<16x16xf32, #tpu.memory_space<vmem>>, vector<16x16xf32>
    %cst = arith.constant dense<0.000000e+00> : vector<16x16xf32>
    %7 = tpu.matmul %4, %6, %cst {dimension_numbers = #tpu.dot_dimension_numbers<[1], [0], [0], [1], [0, 0, 1, 1], [], []>} : vector<16x16xf32>, vector<16x16xf32>, vector<16x16xf32> -> vector<16x16xf32>
    %8 = arith.addf %5, %7 : vector<16x16xf32>
    %c0_6 = arith.constant 0 : index
    %c0_7 = arith.constant 0 : index
    %9 = vector.load %arg10[%c0_6, %c0_7] : memref<16x16xf32, #tpu.memory_space<vmem>>, vector<16x16xf32>
    tpu.vector_store %arg10[%c0_6, %c0_7], %8 {strides = array<i32>} : memref<16x16xf32, #tpu.memory_space<vmem>>, vector<16x16xf32>,
    %c0_i32_8 = arith.constant 0 : i32
    %10 = arith.cmpi eq, %arg1, %c0_i32_8 : i32
    %11 = arith.extui %10 : i1 to i32
    %c0_i32_9 = arith.constant 0 : i32
    %12 = arith.cmpi ne, %11, %c0_i32_9 : i32
    scf.if %12 {
      %c0_10 = arith.constant 0 : index
      %c0_11 = arith.constant 0 : index
      %13 = vector.load %arg10[%c0_10, %c0_11] : memref<16x16xf32, #tpu.memory_space<vmem>>, vector<16x16xf32>
      %c0_12 = arith.constant 0 : index
      %c0_13 = arith.constant 0 : index
      %14 = vector.load %arg2[%c0_12, %c0_13] : memref<16x1xf32, #tpu.memory_space<vmem>>, vector<16x1xf32>
      %15 = vector.broadcast %14 : vector<16x1xf32> to vector<16x16xf32>
      %16 = arith.mulf %13, %15 : vector<16x16xf32>
      %c0_14 = arith.constant 0 : index
      %c0_15 = arith.constant 0 : index
      %17 = vector.load %arg6[%c0_14, %c0_15] : memref<16x64xf32, #tpu.memory_space<vmem>>, vector<16x64xf32>
      %cst_16 = arith.constant dense<0.000000e+00> : vector<16x64xf32>
      %18 = tpu.matmul %16, %17, %cst_16 {dimension_numbers = #tpu.dot_dimension_numbers<[1], [0], [0], [1], [0, 0, 1, 1], [], []>} : vector<16x16xf32>, vector<16x64xf32>, vector<16x64xf32> -> vector<16x64xf32>
      %c0_17 = arith.constant 0 : index
      %c0_18 = arith.constant 0 : index
      %19 = vector.load %arg5[%c0_17, %c0_18] : memref<16x16xf32, #tpu.memory_space<vmem>>, vector<16x16xf32>
      %c0_19 = arith.constant 0 : index
      %c0_20 = arith.constant 0 : index
      %20 = vector.load %arg7[%c0_19, %c0_20] : memref<16x64xf32, #tpu.memory_space<vmem>>, vector<16x64xf32>
      %cst_21 = arith.constant dense<0.000000e+00> : vector<16x64xf32>
      %21 = tpu.matmul %19, %20, %cst_21 {dimension_numbers = #tpu.dot_dimension_numbers<[1], [0], [0], [1], [0, 0, 1, 1], [], []>} : vector<16x16xf32>, vector<16x64xf32>, vector<16x64xf32> -> vector<16x64xf32>
      %22 = arith.addf %18, %21 : vector<16x64xf32>
      %c0_22 = arith.constant 0 : index
      %c0_23 = arith.constant 0 : index
      %23 = vector.load %arg8[%c0_22, %c0_23] : memref<1x64xf32, #tpu.memory_space<vmem>>, vector<1x64xf32>
      %24 = vector.broadcast %23 : vector<1x64xf32> to vector<16x64xf32>
      %25 = arith.addf %22, %24 : vector<16x64xf32>
      %cst_24 = arith.constant 0.000000e+00 : f32
      %26 = vector.broadcast %cst_24 : f32 to vector<16x64xf32>
      %27 = arith.maximumf %25, %26 : vector<16x64xf32>
      %c0_25 = arith.constant 0 : index
      %c0_26 = arith.constant 0 : index
      %28 = vector.load %arg9[%c0_25, %c0_26] : memref<16x64xf32, #tpu.memory_space<vmem>>, vector<16x64xf32>
      tpu.vector_store %arg9[%c0_25, %c0_26], %27 {strides = array<i32>} : memref<16x64xf32, #tpu.memory_space<vmem>>, vector<16x64xf32>,
    } else {
    }
    return
  }
  func.func @transform_0(%arg0: i32, %arg1: i32) -> (i32, i32) {
    %c0_i32 = arith.constant 0 : i32
    %c0_i32_0 = arith.constant 0 : i32
    return %arg0, %c0_i32 : i32, i32
  }
  func.func @transform_1(%arg0: i32, %arg1: i32) -> (i32, i32) {
    %c0_i32 = arith.constant 0 : i32
    return %arg0, %arg1 : i32, i32
  }
  func.func @transform_2(%arg0: i32, %arg1: i32) -> (i32, i32) {
    %c0_i32 = arith.constant 0 : i32
    %c0_i32_0 = arith.constant 0 : i32
    return %arg1, %c0_i32 : i32, i32
  }
  func.func @transform_3(%arg0: i32, %arg1: i32) -> (i32, i32) {
    %c0_i32 = arith.constant 0 : i32
    %c0_i32_0 = arith.constant 0 : i32
    return %arg0, %c0_i32 : i32, i32
  }
  func.func @transform_4(%arg0: i32, %arg1: i32) -> (i32, i32) {
    %c0_i32 = arith.constant 0 : i32
    %c0_i32_0 = arith.constant 0 : i32
    %c0_i32_1 = arith.constant 0 : i32
    return %c0_i32, %c0_i32_0 : i32, i32
  }
  func.func @transform_5(%arg0: i32, %arg1: i32) -> (i32, i32) {
    %c0_i32 = arith.constant 0 : i32
    %c0_i32_0 = arith.constant 0 : i32
    %c0_i32_1 = arith.constant 0 : i32
    return %c0_i32, %c0_i32_0 : i32, i32
  }
  func.func @transform_6(%arg0: i32, %arg1: i32) -> (i32, i32) {
    %c0_i32 = arith.constant 0 : i32
    %c0_i32_0 = arith.constant 0 : i32
    %c0_i32_1 = arith.constant 0 : i32
    return %c0_i32, %c0_i32_0 : i32, i32
  }
  func.func @transform_7(%arg0: i32, %arg1: i32) -> (i32, i32) {
    %c0_i32 = arith.constant 0 : i32
    %c0_i32_0 = arith.constant 0 : i32
    return %arg0, %c0_i32 : i32, i32
  }
}

</mosaic_0001>

<llo_original>
// kernel: tpu_custom_call.1
$region0: #{tpu_custom_call.1}
  #allocation0 [shape = 'u32[]', space=smem, size = 0x4, offset = 0x4, fixed_abs, tag = 'smem constant byte address 0x4 - core index']
  #allocation1 [shape = 'u32[144,128]{1,0:T(1,128)}', space=vmem, size = 0x12000, scoped, tag = 'internal scratch']
  #allocation2 [shape = 'f32[16,16]{1,0:T(8,128)}', space=vmem, size = 0x2000, scoped, tag = 'scratch operand']
  %s0 = inlined_call_operand.vmem [shape: f32[16,1], index: 0, kind: input, shape index: {}]
  %s1 = inlined_call_operand.hbm [shape: bf16[16,16], index: 1, kind: input, shape index: {}]
  %s2 = inlined_call_operand.vmem [shape: f32[16,16], index: 2, kind: input, shape index: {}]
  %s3 = inlined_call_operand.hbm [shape: f32[16,16], index: 3, kind: input, shape index: {}]
  %s4 = inlined_call_operand.hbm [shape: f32[16,64], index: 4, kind: input, shape index: {}]
  %s5 = inlined_call_operand.hbm [shape: f32[16,64], index: 5, kind: input, shape index: {}]
  %s6 = inlined_call_operand.vmem [shape: f32[1,64], index: 6, kind: input, shape index: {}]
  %s7 = inlined_call_operand.hbm [shape: f32[16,64], index: 7, kind: output, shape index: {}]
  %s8 = sld [smem:[#allocation0]]
  $region62: #{tpu_custom_call.1} parent=0
    _
  %s10 = ssub.s32 1, %s8
  %s11 = scalar_select 0, %s10, %s8
  $region1: #{tpu_custom_call.1} parent=0
    #allocation3 [shape = 'u8[4096]{0}', space=vmem, size = 0x1000, scoped, tag = 'input window, operand 1, single buffered']
    #allocation4 [shape = 's32[1]{0}', space=sflag, size = 0x4, scoped, tag = 'scoped memory for tpu_custom_call.1']
    #allocation5 [shape = 's32[1]{0}', space=sflag, size = 0x4, scoped, tag = 'scoped memory for tpu_custom_call.1']
    #allocation6 [shape = 'u8[8192]{0}', space=vmem, size = 0x2000, scoped, tag = 'input window, operand 3, single buffered']
    #allocation7 [shape = 's32[1]{0}', space=sflag, size = 0x4, scoped, tag = 'scoped memory for tpu_custom_call.1']
    #allocation8 [shape = 'u8[8192]{0}', space=vmem, size = 0x2000, scoped, tag = 'input window, operand 4, single buffered']
    #allocation9 [shape = 'u8[8192]{0}', space=vmem, size = 0x2000, scoped, tag = 'input window, operand 5, single buffered']
    #allocation10 [shape = 's32[1]{0}', space=sflag, size = 0x4, scoped, tag = 'scoped memory for tpu_custom_call.1']
    #allocation11 [shape = 'u8[8192]{0}', space=vmem, size = 0x2000, scoped, tag = 'output window, operand 0, single buffered']
    %12 = vsyncpa [#allocation4], 0
    %13 = vsyncpa [#allocation7], 0
    %14 = vsyncpa [#allocation10], 0
    %15 = vsyncpa [#allocation5], 0
    // Predicated region
    $region2: #{tpu_custom_call.1} parent=1 // pred_check
      _
    $region3: #{tpu_custom_call.1} parent=1 // pred_check_branch
      %17 = sbr.rel (0) target = $region5
    $region4: #{tpu_custom_call.1} parent=1 // pred_region
      _
    $region5: #{tpu_custom_call.1} parent=1 // pred_fallthru
      _
    // Predicated region
    $region6: #{tpu_custom_call.1} parent=1 // pred_check
      _
    $region7: #{tpu_custom_call.1} parent=1 // pred_check_branch
      %19 = sbr.rel (0) target = $region9
    $region8: #{tpu_custom_call.1} parent=1 // pred_region
      %s21 = ssub.s32 128, 128
      %22 = vsyncadd [#allocation4], %s21
      %s23 = sshll.u32 [#allocation3], 4
      %s24 = int_to_ptr.vmem [resolvable:$true] %s23
      %29 = dma.hbm_to_vmem [thread:$0]  %s1, 128, %s24, [#allocation4], 64, 64, 4
    $region9: #{tpu_custom_call.1} parent=1 // pred_fallthru
      _
    // Predicated region
    $region10: #{tpu_custom_call.1} parent=1 // pred_check
      _
    $region11: #{tpu_custom_call.1} parent=1 // pred_check_branch
      %31 = sbr.rel (0) target = $region13
    $region12: #{tpu_custom_call.1} parent=1 // pred_region
      _
    $region13: #{tpu_custom_call.1} parent=1 // pred_fallthru
      _
    // Predicated region
    $region14: #{tpu_custom_call.1} parent=1 // pred_check
      _
    $region15: #{tpu_custom_call.1} parent=1 // pred_check_branch
      %33 = sbr.rel (0) target = $region17
    $region16: #{tpu_custom_call.1} parent=1 // pred_region
      %s35 = ssub.s32 256, 256
      %36 = vsyncadd [#allocation7], %s35
      %s37 = sshll.u32 [#allocation6], 4
      %s38 = int_to_ptr.vmem [resolvable:$true] %s37
      %43 = dma.hbm_to_vmem [thread:$0]  %s3, 256, %s38, [#allocation7], 128, 128, 8
    $region17: #{tpu_custom_call.1} parent=1 // pred_fallthru
      _
    // Predicated region
    $region18: #{tpu_custom_call.1} parent=1 // pred_check
      _
    $region19: #{tpu_custom_call.1} parent=1 // pred_check_branch
      %45 = sbr.rel (0) target = $region21
    $region20: #{tpu_custom_call.1} parent=1 // pred_region
      %s47 = ssub.s32 256, 256
      %48 = vsyncadd [#allocation7], %s47
      %s49 = sshll.u32 [#allocation8], 4
      %s50 = int_to_ptr.vmem [resolvable:$true] %s49
      %55 = dma.hbm_to_vmem [thread:$0]  %s4, 256, %s50, [#allocation7], 128, 128, 8
    $region21: #{tpu_custom_call.1} parent=1 // pred_fallthru
      _
    // Predicated region
    $region22: #{tpu_custom_call.1} parent=1 // pred_check
      _
    $region23: #{tpu_custom_call.1} parent=1 // pred_check_branch
      %57 = sbr.rel (0) target = $region25
    $region24: #{tpu_custom_call.1} parent=1 // pred_region
      %s59 = ssub.s32 256, 256
      %60 = vsyncadd [#allocation10], %s59
      %s61 = sshll.u32 [#allocation9], 4
      %s62 = int_to_ptr.vmem [resolvable:$true] %s61
      %67 = dma.hbm_to_vmem [thread:$0]  %s5, 256, %s62, [#allocation10], 128, 128, 8
    $region25: #{tpu_custom_call.1} parent=1 // pred_fallthru
      _
    // Predicated region
    $region26: #{tpu_custom_call.1} parent=1 // pred_check
      _
    $region27: #{tpu_custom_call.1} parent=1 // pred_check_branch
      %69 = sbr.rel (0) target = $region29
    $region28: #{tpu_custom_call.1} parent=1 // pred_region
      _
    $region29: #{tpu_custom_call.1} parent=1 // pred_fallthru
      _
    // Predicated region
    $region30: #{tpu_custom_call.1} parent=1 // pred_check
      _
    $region31: #{tpu_custom_call.1} parent=1 // pred_check_branch
      %71 = sbr.rel (0) target = $region33
    $region32: #{tpu_custom_call.1} parent=1 // pred_region
      %72 = dma.done [#allocation4], 128
    $region33: #{tpu_custom_call.1} parent=1 // pred_fallthru
      _
    // Predicated region
    $region34: #{tpu_custom_call.1} parent=1 // pred_check
      _
    $region35: #{tpu_custom_call.1} parent=1 // pred_check_branch
      %74 = sbr.rel (0) target = $region37
    $region36: #{tpu_custom_call.1} parent=1 // pred_region
      %75 = dma.done [#allocation7], 256
    $region37: #{tpu_custom_call.1} parent=1 // pred_fallthru
      _
    // Predicated region
    $region38: #{tpu_custom_call.1} parent=1 // pred_check
      _
    $region39: #{tpu_custom_call.1} parent=1 // pred_check_branch
      %77 = sbr.rel (0) target = $region41
    $region40: #{tpu_custom_call.1} parent=1 // pred_region
      %78 = dma.done [#allocation7], 256
    $region41: #{tpu_custom_call.1} parent=1 // pred_fallthru
      _
    // Predicated region
    $region42: #{tpu_custom_call.1} parent=1 // pred_check
      _
    $region43: #{tpu_custom_call.1} parent=1 // pred_check_branch
      %80 = sbr.rel (0) target = $region45
    $region44: #{tpu_custom_call.1} parent=1 // pred_region
      %81 = dma.done [#allocation10], 256
    $region45: #{tpu_custom_call.1} parent=1 // pred_fallthru
      _
    %p82 = scmp.eq.s32.totalorder 0, 0
    // Predicated region
    $region46: #{tpu_custom_call.1} parent=1 // pred_check
      %p83 = pneg %p82
    $region47: #{tpu_custom_call.1} parent=1 // pred_check_branch
      %85 = sbr.rel (%p83) target = $region49
    $region48: #{tpu_custom_call.1} parent=1 // pred_region
      %vm86 = vcmask 130048
      %87 = vst.msk [vmem:[#allocation2] sm:$0xff] %vm86, 0.0
      %88 = vst.msk [vmem:[#allocation2 + $0x8] sm:$0xff] %vm86, 0.0
    $region49: #{tpu_custom_call.1} parent=1 // pred_fallthru
      _
    %v89 = vld [vmem:[#allocation3] sm:$0xf]
    %v90 = vld [vmem:[#allocation3 + $0x4] sm:$0xf]
    %v91 = vunpack.c.l.bf16 %v89
    %v92 = vunpack.c.l.bf16 %v90
    %v93 = vld [vmem:[#allocation2] sm:$0xff]
    %v94 = vld [vmem:[#allocation2 + $0x8] sm:$0xff]
    %v95 = vld [vmem:[%s2] sm:$0xff]
    %v96 = vld [vmem:[%s2 + $0x8] sm:$0xff]
    %vm97 = vcmask 130048
    %v99 = vsel %vm97, %v91, 0
    %v102 = vsel %vm97, %v92, 0
    %104 = vmatprep.subr.mxu0 0.0
    %105 = vmatpush1.msra.mxu0 0.0
    %106 = vmatprep.subr.mxu0 0.0
    %107 = vmatpush1.msra.mxu0 0.0
    %108 = vmatprep.subr.mxu0 0.0
    %109 = vmatpush1.msra.mxu0 0.0
    %110 = vmatprep.subr.mxu0 0.0
    %111 = vmatpush1.msra.mxu0 0.0
    %112 = vmatprep.subr.mxu0 0.0
    %113 = vmatpush1.msra.mxu0 0.0
    %114 = vmatprep.subr.mxu0 0.0
    %115 = vmatpush1.msra.mxu0 0.0
    %116 = vmatprep.subr.mxu0 0.0
    %117 = vmatpush1.msra.mxu0 0.0
    %118 = vmatprep.subr.mxu0 0.0
    %119 = vmatpush1.msra.mxu0 0.0
    %120 = vmatprep.subr.mxu0 0.0
    %121 = vmatpush1.msra.mxu0 0.0
    %122 = vmatprep.subr.mxu0 0.0
    %123 = vmatpush1.msra.mxu0 0.0
    %124 = vmatprep.subr.mxu0 0.0
    %125 = vmatpush1.msra.mxu0 0.0
    %126 = vmatprep.subr.mxu0 0.0
    %127 = vmatpush1.msra.mxu0 0.0
    %128 = vmatprep.subr.mxu0 0.0
    %129 = vmatpush1.msra.mxu0 0.0
    %130 = vmatprep.subr.mxu0 0.0
    %131 = vmatpush1.msra.mxu0 0.0
    %132 = vmatprep.subr.mxu0 0.0
    %133 = vmatpush1.msra.mxu0 %v96
    %134 = vmatprep.subr.mxu0 0.0
    %135 = vmatpush1.msra.mxu0 %v95
    %136 = vmatprep.subr.mxu0 0.0
    %137 = vmatpush2.msra.mxu0 0.0
    %138 = vmatprep.subr.mxu0 0.0
    %139 = vmatpush2.msra.mxu0 0.0
    %140 = vmatprep.subr.mxu0 0.0
    %141 = vmatpush2.msra.mxu0 0.0
    %142 = vmatprep.subr.mxu0 0.0
    %143 = vmatpush2.msra.mxu0 0.0
    %144 = vmatprep.subr.mxu0 0.0
    %145 = vmatpush2.msra.mxu0 0.0
    %146 = vmatprep.subr.mxu0 0.0
    %147 = vmatpush2.msra.mxu0 0.0
    %148 = vmatprep.subr.mxu0 0.0
    %149 = vmatpush2.msra.mxu0 0.0
    %150 = vmatprep.subr.mxu0 0.0
    %151 = vmatpush2.msra.mxu0 0.0
    %152 = vmatprep.subr.mxu0 0.0
    %153 = vmatpush2.msra.mxu0 0.0
    %154 = vmatprep.subr.mxu0 0.0
    %155 = vmatpush2.msra.mxu0 0.0
    %156 = vmatprep.subr.mxu0 0.0
    %157 = vmatpush2.msra.mxu0 0.0
    %158 = vmatprep.subr.mxu0 0.0
    %159 = vmatpush2.msra.mxu0 0.0
    %160 = vmatprep.subr.mxu0 0.0
    %161 = vmatpush2.msra.mxu0 0.0
    %162 = vmatprep.subr.mxu0 0.0
    %163 = vmatpush2.msra.mxu0 0.0
    %164 = vmatprep.subr.mxu0 0.0
    %165 = vmatpush2.msra.mxu0 0.0
    %166 = vmatprep.subr.mxu0 0.0
    %167 = vmatpush2.msra.mxu0 0.0
    %168 = vmatprep.mubr.f32.mxu0 0.0
    %169 = vmatmul.mubr.f32.gmra.mxu0 %v99
    %v170 = vpop.f32.mrf.mxu0
    %v171 = vadd.f32 0.0, %v170
    %v172 = vpop.f32.mrf.mxu0
    %173 = vmatprep.mubr.f32.mxu0 0.0
    %174 = vmatmul.mubr.f32.gmra.mxu0 %v102
    %v175 = vpop.f32.mrf.mxu0
    %v176 = vadd.f32 0.0, %v175
    %v177 = vpop.f32.mrf.mxu0
    %178 = vdwg.mxu0
    %v179 = vadd.f32 %v93, %v171
    %v180 = vadd.f32 %v94, %v176
    %181 = vst.msk [vmem:[#allocation2] sm:$0xff] %vm97, %v179
    %182 = vst.msk [vmem:[#allocation2 + $0x8] sm:$0xff] %vm97, %v180
    // Predicated region
    $region50: #{tpu_custom_call.1} parent=1 // pred_check
      %p183 = pneg %p82
    $region51: #{tpu_custom_call.1} parent=1 // pred_check_branch
      %185 = sbr.rel (%p183) target = $region53
    $region52: #{tpu_custom_call.1} parent=1 // pred_region
      %v186 = vld [vmem:[#allocation2] sm:$0xff]
      %v187 = vld [vmem:[#allocation2 + $0x8] sm:$0xff]
      %v188 = vld [vmem:[%s0] sm:$0xff]
      %v189 = vld [vmem:[%s0 + $0x8] sm:$0xff]
      %191 = vset.pattern.permute.xlu0 0
      %192 = vperm.xlu0 %191, %v188
      %v193 = vpop.permute.xlu0 %192
      %196 = vset.pattern.permute.xlu0 0
      %197 = vperm.xlu0 %196, %v189
      %v198 = vpop.permute.xlu0 %197
      %v200 = vmul.f32 %v186, %v193
      %v201 = vmul.f32 %v187, %v198
      %v202 = vld [vmem:[#allocation8] sm:$0xff]
      %v203 = vld [vmem:[#allocation8 + $0x8] sm:$0xff]
      %v204 = vld [vmem:[#allocation6] sm:$0xff]
      %v205 = vld [vmem:[#allocation6 + $0x8] sm:$0xff]
      %v206 = vld [vmem:[#allocation9] sm:$0xff]
      %v207 = vld [vmem:[#allocation9 + $0x8] sm:$0xff]
      %v209 = vsel %vm97, %v204, 0
      %v212 = vsel %vm97, %v205, 0
      %214 = vmatprep.subr.mxu0 0.0
      %215 = vmatpush1.msra.mxu0 0.0
      %216 = vmatprep.subr.mxu0 0.0
      %217 = vmatpush1.msra.mxu0 0.0
      %218 = vmatprep.subr.mxu0 0.0
      %219 = vmatpush1.msra.mxu0 0.0
      %220 = vmatprep.subr.mxu0 0.0
      %221 = vmatpush1.msra.mxu0 0.0
      %222 = vmatprep.subr.mxu0 0.0
      %223 = vmatpush1.msra.mxu0 0.0
      %224 = vmatprep.subr.mxu0 0.0
      %225 = vmatpush1.msra.mxu0 0.0
      %226 = vmatprep.subr.mxu0 0.0
      %227 = vmatpush1.msra.mxu0 0.0
      %228 = vmatprep.subr.mxu0 0.0
      %229 = vmatpush1.msra.mxu0 0.0
      %230 = vmatprep.subr.mxu0 0.0
      %231 = vmatpush1.msra.mxu0 0.0
      %232 = vmatprep.subr.mxu0 0.0
      %233 = vmatpush1.msra.mxu0 0.0
      %234 = vmatprep.subr.mxu0 0.0
      %235 = vmatpush1.msra.mxu0 0.0
      %236 = vmatprep.subr.mxu0 0.0
      %237 = vmatpush1.msra.mxu0 0.0
      %238 = vmatprep.subr.mxu0 0.0
      %239 = vmatpush1.msra.mxu0 0.0
      %240 = vmatprep.subr.mxu0 0.0
      %241 = vmatpush1.msra.mxu0 0.0
      %242 = vmatprep.subr.mxu0 0.0
      %243 = vmatpush1.msra.mxu0 %v207
      %244 = vmatprep.subr.mxu0 0.0
      %245 = vmatpush1.msra.mxu0 %v206
      %246 = vmatprep.subr.mxu0 0.0
      %247 = vmatpush2.msra.mxu0 0.0
      %248 = vmatprep.subr.mxu0 0.0
      %249 = vmatpush2.msra.mxu0 0.0
      %250 = vmatprep.subr.mxu0 0.0
      %251 = vmatpush2.msra.mxu0 0.0
      %252 = vmatprep.subr.mxu0 0.0
      %253 = vmatpush2.msra.mxu0 0.0
      %254 = vmatprep.subr.mxu0 0.0
      %255 = vmatpush2.msra.mxu0 0.0
      %256 = vmatprep.subr.mxu0 0.0
      %257 = vmatpush2.msra.mxu0 0.0
      %258 = vmatprep.subr.mxu0 0.0
      %259 = vmatpush2.msra.mxu0 0.0
      %260 = vmatprep.subr.mxu0 0.0
      %261 = vmatpush2.msra.mxu0 0.0
      %262 = vmatprep.subr.mxu0 0.0
      %263 = vmatpush2.msra.mxu0 0.0
      %264 = vmatprep.subr.mxu0 0.0
      %265 = vmatpush2.msra.mxu0 0.0
      %266 = vmatprep.subr.mxu0 0.0
      %267 = vmatpush2.msra.mxu0 0.0
      %268 = vmatprep.subr.mxu0 0.0
      %269 = vmatpush2.msra.mxu0 0.0
      %270 = vmatprep.subr.mxu0 0.0
      %271 = vmatpush2.msra.mxu0 0.0
      %272 = vmatprep.subr.mxu0 0.0
      %273 = vmatpush2.msra.mxu0 0.0
      %274 = vmatprep.subr.mxu0 0.0
      %275 = vmatpush2.msra.mxu0 0.0
      %276 = vmatprep.subr.mxu0 0.0
      %277 = vmatpush2.msra.mxu0 0.0
      %278 = vmatprep.mubr.f32.mxu0 0.0
      %279 = vmatmul.mubr.f32.gmra.mxu0 %v209
      %v280 = vpop.f32.mrf.mxu0
      %v281 = vadd.f32 0.0, %v280
      %v282 = vpop.f32.mrf.mxu0
      %283 = vmatprep.mubr.f32.mxu0 0.0
      %284 = vmatmul.mubr.f32.gmra.mxu0 %v212
      %v285 = vpop.f32.mrf.mxu0
      %v286 = vadd.f32 0.0, %v285
      %v287 = vpop.f32.mrf.mxu0
      %288 = vdwg.mxu0
      %v290 = vsel %vm97, %v200, 0
      %v293 = vsel %vm97, %v201, 0
      %295 = vmatprep.subr.mxu0 0.0
      %296 = vmatpush1.msra.mxu0 0.0
      %297 = vmatprep.subr.mxu0 0.0
      %298 = vmatpush1.msra.mxu0 0.0
      %299 = vmatprep.subr.mxu0 0.0
      %300 = vmatpush1.msra.mxu0 0.0
      %301 = vmatprep.subr.mxu0 0.0
      %302 = vmatpush1.msra.mxu0 0.0
      %303 = vmatprep.subr.mxu0 0.0
      %304 = vmatpush1.msra.mxu0 0.0
      %305 = vmatprep.subr.mxu0 0.0
      %306 = vmatpush1.msra.mxu0 0.0
      %307 = vmatprep.subr.mxu0 0.0
      %308 = vmatpush1.msra.mxu0 0.0
      %309 = vmatprep.subr.mxu0 0.0
      %310 = vmatpush1.msra.mxu0 0.0
      %311 = vmatprep.subr.mxu0 0.0
      %312 = vmatpush1.msra.mxu0 0.0
      %313 = vmatprep.subr.mxu0 0.0
      %314 = vmatpush1.msra.mxu0 0.0
      %315 = vmatprep.subr.mxu0 0.0
      %316 = vmatpush1.msra.mxu0 0.0
      %317 = vmatprep.subr.mxu0 0.0
      %318 = vmatpush1.msra.mxu0 0.0
      %319 = vmatprep.subr.mxu0 0.0
      %320 = vmatpush1.msra.mxu0 0.0
      %321 = vmatprep.subr.mxu0 0.0
      %322 = vmatpush1.msra.mxu0 0.0
      %323 = vmatprep.subr.mxu0 0.0
      %324 = vmatpush1.msra.mxu0 %v203
      %325 = vmatprep.subr.mxu0 0.0
      %326 = vmatpush1.msra.mxu0 %v202
      %327 = vmatprep.subr.mxu0 0.0
      %328 = vmatpush2.msra.mxu0 0.0
      %329 = vmatprep.subr.mxu0 0.0
      %330 = vmatpush2.msra.mxu0 0.0
      %331 = vmatprep.subr.mxu0 0.0
      %332 = vmatpush2.msra.mxu0 0.0
      %333 = vmatprep.subr.mxu0 0.0
      %334 = vmatpush2.msra.mxu0 0.0
      %335 = vmatprep.subr.mxu0 0.0
      %336 = vmatpush2.msra.mxu0 0.0
      %337 = vmatprep.subr.mxu0 0.0
      %338 = vmatpush2.msra.mxu0 0.0
      %339 = vmatprep.subr.mxu0 0.0
      %340 = vmatpush2.msra.mxu0 0.0
      %341 = vmatprep.subr.mxu0 0.0
      %342 = vmatpush2.msra.mxu0 0.0
      %343 = vmatprep.subr.mxu0 0.0
      %344 = vmatpush2.msra.mxu0 0.0
      %345 = vmatprep.subr.mxu0 0.0
      %346 = vmatpush2.msra.mxu0 0.0
      %347 = vmatprep.subr.mxu0 0.0
      %348 = vmatpush2.msra.mxu0 0.0
      %349 = vmatprep.subr.mxu0 0.0
      %350 = vmatpush2.msra.mxu0 0.0
      %351 = vmatprep.subr.mxu0 0.0
      %352 = vmatpush2.msra.mxu0 0.0
      %353 = vmatprep.subr.mxu0 0.0
      %354 = vmatpush2.msra.mxu0 0.0
      %355 = vmatprep.subr.mxu0 0.0
      %356 = vmatpush2.msra.mxu0 0.0
      %357 = vmatprep.subr.mxu0 0.0
      %358 = vmatpush2.msra.mxu0 0.0
      %359 = vmatprep.mubr.f32.mxu0 0.0
      %360 = vmatmul.mubr.f32.gmra.mxu0 %v290
      %v361 = vpop.f32.mrf.mxu0
      %v362 = vadd.f32 %v281, %v361
      %v363 = vpop.f32.mrf.mxu0
      %364 = vmatprep.mubr.f32.mxu0 0.0
      %365 = vmatmul.mubr.f32.gmra.mxu0 %v293
      %v366 = vpop.f32.mrf.mxu0
      %v367 = vadd.f32 %v286, %v366
      %v368 = vpop.f32.mrf.mxu0
      %369 = vdwg.mxu0
      %v370 = vld [vmem:[%s6] sm:$0x1]
      %v372 = vlaneseq
      %v373 = vshrl.u32 %v372, 7
      %v374 = vsub.s32 0, %v373
      %v375 = vrot.slane %v370, %v374
      %v377 = vadd.f32 %v362, %v375
      %v378 = vadd.f32 %v367, %v375
      %v379 = vmax.f32 %v377, 0.0
      %v380 = vmax.f32 %v378, 0.0
      %vm381 = vcmask 523264
      %382 = vst.msk [vmem:[#allocation11] sm:$0xff] %vm381, %v379
      %383 = vst.msk [vmem:[#allocation11 + $0x8] sm:$0xff] %vm381, %v380
    $region53: #{tpu_custom_call.1} parent=1 // pred_fallthru
      _
    // Predicated region
    $region54: #{tpu_custom_call.1} parent=1 // pred_check
      _
    $region55: #{tpu_custom_call.1} parent=1 // pred_check_branch
      %385 = sbr.rel (0) target = $region57
    $region56: #{tpu_custom_call.1} parent=1 // pred_region
      %s387 = ssub.s32 256, 256
      %388 = vsyncadd [#allocation5], %s387
      %s389 = sshll.u32 [#allocation11], 4
      %s390 = int_to_ptr.vmem [resolvable:$true] %s389
      %395 = dma.vmem_to_hbm [thread:$0]  %s390, 256, %s7, [#allocation5], 128, 128, 8
    $region57: #{tpu_custom_call.1} parent=1 // pred_fallthru
      _
    // Predicated region
    $region58: #{tpu_custom_call.1} parent=1 // pred_check
      _
    $region59: #{tpu_custom_call.1} parent=1 // pred_check_branch
      %397 = sbr.rel (0) target = $region61
    $region60: #{tpu_custom_call.1} parent=1 // pred_region
      %398 = dma.done [#allocation5], 256
    $region61: #{tpu_custom_call.1} parent=1 // pred_fallthru
      _
    %399 = vsyncpa [#allocation4], 1
    %400 = vsyncpa [#allocation7], 1
    %401 = vsyncpa [#allocation10], 1
    %402 = vsyncpa [#allocation5], 1

</llo_original>
